<compile_context>
chip_gen: v7x
topology: tpu7x:2x2x1
jax: 0.10.0
libtpu: 0.0.40
codegen_flags: <defaults>
</compile_context>

<pallas_src>
import jax
import jax.numpy as jnp
from jax.experimental import pallas as pl
from jax.experimental.pallas import tpu as pltpu


# ----------------------------- kernel ---------------------------------------
def _dma_copy_all_kernel(*refs):
    """Direct HBM->HBM copy of every table in a single kernel invocation.

    refs layout: (in_0..in_{n-1}, out_0..out_{n-1}, sem_array[n]).
    All refs live in HBM (memory_space=pl.ANY); no VMEM staging.  Every DMA is
    started before any wait so the DMA engines keep the copies overlapped /
    back-to-back across table boundaries.
    """
    n = (len(refs) - 1) // 2
    in_refs = refs[:n]
    out_refs = refs[n:2 * n]
    sems = refs[2 * n]

    copies = []
    for i in range(n):
        cp = pltpu.make_async_copy(in_refs[i], out_refs[i], sems.at[i])
        cp.start()
        copies.append(cp)
    for cp in copies:
        cp.wait()


# ----------------------------- wrapper --------------------------------------
def materialize_x_dict(x_dict):
    """Return a freshly materialized copy of every embedding table.

    Single pallas_call, one HBM->HBM DMA per table, zero VMEM usage.
    Arbitrary (ragged, non-128-multiple) shapes are fine: the DMA works on the
    raw HBM layout and never touches vregs.
    """
    names = list(x_dict.keys())
    tables = [x_dict[nm] for nm in names]
    if not tables:
        return {}

    n = len(tables)
    total_bytes = sum(int(t.size) * jnp.dtype(t.dtype).itemsize for t in tables)

    outs = pl.pallas_call(
        _dma_copy_all_kernel,
        out_shape=tuple(jax.ShapeDtypeStruct(t.shape, t.dtype) for t in tables),
        in_specs=[pl.BlockSpec(memory_space=pl.ANY) for _ in range(n)],
        out_specs=tuple(pl.BlockSpec(memory_space=pl.ANY) for _ in range(n)),
        scratch_shapes=[pltpu.SemaphoreType.DMA((n,))],
        cost_estimate=pl.CostEstimate(
            flops=0, transcendentals=0, bytes_accessed=2 * total_bytes),
    )(*tables)

    return dict(zip(names, list(outs)))


# ------------------------------ module --------------------------------------
class GNNPallas:
    """JAX/Pallas port of kgate.encoders.GNN (with its empty conv stack)."""

    def __init__(self, node_embeddings, hetero_node_type, aggr: str = "sum"):
        self.deep = True
        self.aggr = aggr
        self.convs = []  # empty in the reference module -> no layers to apply
        self.x_dict = {
            node_type: jnp.asarray(emb)
            for node_type, emb in zip(hetero_node_type, node_embeddings)
        }

    def forward(self, edge_index_dict=None, materialize: bool = False):
        # Reference forward: edge indices are accepted but never consumed
        # (convs is empty), so we neither transfer nor touch them.
        x_dict = self.x_dict
        for conv in self.convs:  # never executes
            x_dict = conv(x_dict, edge_index_dict)
        if materialize:
            # Optional explicit copy through the Pallas DMA kernel.
            x_dict = materialize_x_dict(x_dict)
        return x_dict


# ------------------------------- demo ---------------------------------------
if __name__ == "__main__":
    key = jax.random.PRNGKey(0)
    k_user, k_item, k_tag, k_edge, k_big = jax.random.split(key, 5)

    # Small synthetic heterogeneous graph: three node types, including one
    # with a feature dim that is NOT a multiple of 128 (narrow-D table) to
    # exercise the arbitrary-shape HBM->HBM DMA path.
    num_users, num_items, num_tags = 16, 8, 50
    emb_dim, tag_dim = 128, 100
    user_emb = jax.random.normal(k_user, (num_users, emb_dim), dtype=jnp.float32)
    item_emb = jax.random.normal(k_item, (num_items, emb_dim), dtype=jnp.float32)
    tag_emb = jax.random.normal(k_tag, (num_tags, tag_dim), dtype=jnp.float32)

    hetero_node_type = ["user", "item", "tag"]
    node_embeddings = [user_emb, item_emb, tag_emb]

    # Synthetic edge_index dict (unused by forward, mirrors HeteroData input).
    num_edges = 32
    edge_index_dict = {
        ("user", "rates", "item"): jnp.stack(
            [
                jax.random.randint(k_edge, (num_edges,), 0, num_users),
                jax.random.randint(k_edge, (num_edges,), 0, num_items),
            ],
            axis=0,
        ).astype(jnp.int32)
    }

    model = GNNPallas(node_embeddings, hetero_node_type, aggr="sum")

    # 1) Hot path: exact reference semantics, zero copies.
    out_fast = model.forward(edge_index_dict)
    assert out_fast["user"] is model.x_dict["user"]
    assert out_fast["item"] is model.x_dict["item"]
    assert out_fast["tag"] is model.x_dict["tag"]

    # 2) Materialized path: one pallas_call, one HBM->HBM DMA per table.
    out_mat = model.forward(edge_index_dict, materialize=True)
    out_mat = jax.tree_util.tree_map(jax.block_until_ready, out_mat)
    assert out_mat["user"].shape == (num_users, emb_dim)
    assert out_mat["item"].shape == (num_items, emb_dim)
    assert out_mat["tag"].shape == (num_tags, tag_dim)
    assert jnp.allclose(out_mat["user"], user_emb)
    assert jnp.allclose(out_mat["item"], item_emb)
    assert jnp.allclose(out_mat["tag"], tag_emb)

    # 3) Exercise the same single-launch path on a larger, ragged-row table
    #    mixed with a small one (heterogeneous sizes in one call).
    big = jax.random.normal(k_big, (1000, 256), dtype=jnp.float32)
    mixed = materialize_x_dict({"big": big, "small": item_emb})
    mixed = jax.tree_util.tree_map(jax.block_until_ready, mixed)
    assert jnp.allclose(mixed["big"], big)
    assert jnp.allclose(mixed["small"], item_emb)

    print("KERNEL_OK")
</pallas_src>

<mosaic_0001>
module attributes {stable_mosaic.version = 11 : i64} {
  func.func @_dma_copy_all_kernel(%arg0: memref<16x128xf32, #tpu.memory_space<any>>, %arg1: memref<8x128xf32, #tpu.memory_space<any>>, %arg2: memref<50x100xf32, #tpu.memory_space<any>>, %arg3: memref<16x128xf32, #tpu.memory_space<any>>, %arg4: memref<8x128xf32, #tpu.memory_space<any>>, %arg5: memref<50x100xf32, #tpu.memory_space<any>>, %arg6: memref<3x!tpu.dma_semaphore, #tpu.memory_space<semaphore_mem>>) attributes {dimension_semantics = [], scalar_prefetch = 0 : i64, scratch_operands = 1 : i64, tpu.core_type = #tpu.core_type<tc>} {
    %c0_i32 = arith.constant 0 : i32
    %0 = tpu.memref_slice %arg6[%c0_i32] : memref<3x!tpu.dma_semaphore, #tpu.memory_space<semaphore_mem>> -> memref<1x!tpu.dma_semaphore, #tpu.memory_space<semaphore_mem>>
    %1 = tpu.memref_squeeze %0 : memref<1x!tpu.dma_semaphore, #tpu.memory_space<semaphore_mem>> -> memref<!tpu.dma_semaphore, #tpu.memory_space<semaphore_mem>>
    tpu.enqueue_dma source(%arg0 : memref<16x128xf32, #tpu.memory_space<any>>) target(%arg3 : memref<16x128xf32, #tpu.memory_space<any>>) target_semaphore(%1 : memref<!tpu.dma_semaphore, #tpu.memory_space<semaphore_mem>>)
    %c1_i32 = arith.constant 1 : i32
    %2 = tpu.memref_slice %arg6[%c1_i32] : memref<3x!tpu.dma_semaphore, #tpu.memory_space<semaphore_mem>> -> memref<1x!tpu.dma_semaphore, #tpu.memory_space<semaphore_mem>>
    %3 = tpu.memref_squeeze %2 : memref<1x!tpu.dma_semaphore, #tpu.memory_space<semaphore_mem>> -> memref<!tpu.dma_semaphore, #tpu.memory_space<semaphore_mem>>
    tpu.enqueue_dma source(%arg1 : memref<8x128xf32, #tpu.memory_space<any>>) target(%arg4 : memref<8x128xf32, #tpu.memory_space<any>>) target_semaphore(%3 : memref<!tpu.dma_semaphore, #tpu.memory_space<semaphore_mem>>)
    %c2_i32 = arith.constant 2 : i32
    %4 = tpu.memref_slice %arg6[%c2_i32] : memref<3x!tpu.dma_semaphore, #tpu.memory_space<semaphore_mem>> -> memref<1x!tpu.dma_semaphore, #tpu.memory_space<semaphore_mem>>
    %5 = tpu.memref_squeeze %4 : memref<1x!tpu.dma_semaphore, #tpu.memory_space<semaphore_mem>> -> memref<!tpu.dma_semaphore, #tpu.memory_space<semaphore_mem>>
    tpu.enqueue_dma source(%arg2 : memref<50x100xf32, #tpu.memory_space<any>>) target(%arg5 : memref<50x100xf32, #tpu.memory_space<any>>) target_semaphore(%5 : memref<!tpu.dma_semaphore, #tpu.memory_space<semaphore_mem>>)
    %c0_i32_0 = arith.constant 0 : i32
    %6 = tpu.memref_slice %arg6[%c0_i32_0] : memref<3x!tpu.dma_semaphore, #tpu.memory_space<semaphore_mem>> -> memref<1x!tpu.dma_semaphore, #tpu.memory_space<semaphore_mem>>
    %7 = tpu.memref_squeeze %6 : memref<1x!tpu.dma_semaphore, #tpu.memory_space<semaphore_mem>> -> memref<!tpu.dma_semaphore, #tpu.memory_space<semaphore_mem>>
    tpu.wait_dma2 semaphore(%7 : memref<!tpu.dma_semaphore, #tpu.memory_space<semaphore_mem>>) src(%arg0 : memref<16x128xf32, #tpu.memory_space<any>>) dst(%arg3 : memref<16x128xf32, #tpu.memory_space<any>>)
    %c1_i32_1 = arith.constant 1 : i32
    %8 = tpu.memref_slice %arg6[%c1_i32_1] : memref<3x!tpu.dma_semaphore, #tpu.memory_space<semaphore_mem>> -> memref<1x!tpu.dma_semaphore, #tpu.memory_space<semaphore_mem>>
    %9 = tpu.memref_squeeze %8 : memref<1x!tpu.dma_semaphore, #tpu.memory_space<semaphore_mem>> -> memref<!tpu.dma_semaphore, #tpu.memory_space<semaphore_mem>>
    tpu.wait_dma2 semaphore(%9 : memref<!tpu.dma_semaphore, #tpu.memory_space<semaphore_mem>>) src(%arg1 : memref<8x128xf32, #tpu.memory_space<any>>) dst(%arg4 : memref<8x128xf32, #tpu.memory_space<any>>)
    %c2_i32_2 = arith.constant 2 : i32
    %10 = tpu.memref_slice %arg6[%c2_i32_2] : memref<3x!tpu.dma_semaphore, #tpu.memory_space<semaphore_mem>> -> memref<1x!tpu.dma_semaphore, #tpu.memory_space<semaphore_mem>>
    %11 = tpu.memref_squeeze %10 : memref<1x!tpu.dma_semaphore, #tpu.memory_space<semaphore_mem>> -> memref<!tpu.dma_semaphore, #tpu.memory_space<semaphore_mem>>
    tpu.wait_dma2 semaphore(%11 : memref<!tpu.dma_semaphore, #tpu.memory_space<semaphore_mem>>) src(%arg2 : memref<50x100xf32, #tpu.memory_space<any>>) dst(%arg5 : memref<50x100xf32, #tpu.memory_space<any>>)
    return
  }
}

</mosaic_0001>

<llo_original>
// kernel: tpu_custom_call.1
$region0: #{tpu_custom_call.1}
  #allocation0 [shape = 'u32[]', space=smem, size = 0x4, offset = 0x4, fixed_abs, tag = 'smem constant byte address 0x4 - core index']
  #allocation1 [shape = 'u32[144,128]{1,0:T(1,128)}', space=vmem, size = 0x12000, scoped, tag = 'internal scratch']
  #allocation2 [shape = 's32[3]{0}', space=sflag, size = 0xc, scoped, tag = 'scratch operand']
  #allocation3 [shape = 's32[]', space=sflag, size = 0x4, offset = 0, fixed_abs, tag = 'sflag constant byte address 0x0 - dummy sync flag']
  #allocation4 [shape = 'u32[0]{0}', space=smem, size = 0, offset = 0, fixed_abs, tag = 'smem constant byte address 0x0 - null']
  #allocation5 [shape = 's32[]', space=sflag, size = 0x4, offset = 0, fixed_abs, tag = 'sflag constant byte address 0x0 - dummy sync flag']
  #allocation6 [shape = 'u32[0]{0}', space=smem, size = 0, offset = 0, fixed_abs, tag = 'smem constant byte address 0x0 - null']
  #allocation7 [shape = 's32[]', space=sflag, size = 0x4, offset = 0, fixed_abs, tag = 'sflag constant byte address 0x0 - dummy sync flag']
  #allocation8 [shape = 'u32[0]{0}', space=smem, size = 0, offset = 0, fixed_abs, tag = 'smem constant byte address 0x0 - null']
  %s0 = inlined_call_operand.hbm [shape: f32[16,128], index: 0, kind: input, shape index: {}]
  %s1 = inlined_call_operand.hbm [shape: f32[8,128], index: 1, kind: input, shape index: {}]
  %s2 = inlined_call_operand.hbm [shape: f32[50,100], index: 2, kind: input, shape index: {}]
  %s3 = inlined_call_operand.hbm [shape: f32[16,128], index: 3, kind: output, shape index: {0}]
  %s4 = inlined_call_operand.hbm [shape: f32[8,128], index: 4, kind: output, shape index: {1}]
  %s5 = inlined_call_operand.hbm [shape: f32[50,100], index: 5, kind: output, shape index: {2}]
  %6 = xla_tuple %s3, %s4, %s5
  %s7 = sld [smem:[#allocation0]]
  $region2: #{tpu_custom_call.1} parent=0
    _
  %s9 = ssub.s32 1, %s7
  %s10 = scalar_select 0, %s9, %s7
  %s12 = sshll.u32 1, 14
  %s13 = sxor.u32 4294967295, %s12
  %s16 = sshll.u32 3, 24
  %s17 = sxor.u32 4294967295, %s16
  %s18 = sand.u32 0, %s17
  %s20 = sor.u32 %s18, 0
  %23 = dma.general %s0, 256, %s3, [#allocation2], [#allocation3], [#allocation4], %s20, 0
  %s24 = scalar_lea.sflag [#allocation2], 1
  %s26 = sshll.u32 1, 14
  %s27 = sxor.u32 4294967295, %s26
  %s30 = sshll.u32 3, 24
  %s31 = sxor.u32 4294967295, %s30
  %s32 = sand.u32 0, %s31
  %s34 = sor.u32 %s32, 0
  %37 = dma.general %s1, 128, %s4, %s24, [#allocation5], [#allocation6], %s34, 0
  %s38 = scalar_lea.sflag [#allocation2], 2
  %s40 = sshll.u32 1, 14
  %s41 = sxor.u32 4294967295, %s40
  %s44 = sshll.u32 3, 24
  %s45 = sxor.u32 4294967295, %s44
  %s46 = sand.u32 0, %s45
  %s48 = sor.u32 %s46, 0
  %51 = dma.general %s2, 800, %s5, %s38, [#allocation7], [#allocation8], %s48, 0
  %s52 = smul.u32 16, 1
  %s53 = sshll.u32 %s52, 4
  %54 = dma.done [#allocation2], %s53
  %s55 = smul.u32 8, 1
  %s56 = sshll.u32 %s55, 4
  %57 = dma.done %s24, %s56
  %s58 = smul.u32 50, 1
  %s59 = sshll.u32 %s58, 4
  %60 = dma.done %s38, %s59
  %61 = vsyncmov [#allocation2]
  %s62 = vpop.sfrf %61
  %p63 = scmp.eq.s32.totalorder %s62, 0
  %p64 = pneg %p63
  %66 = shalt.err (%p64)
  %s67 = scalar_lea.sflag [#allocation2], 1
  %68 = vsyncmov %s67
  %s69 = vpop.sfrf %68
  %p70 = scmp.eq.s32.totalorder %s69, 0
  %p71 = pneg %p70
  %73 = shalt.err (%p71)
  %s74 = scalar_lea.sflag [#allocation2], 2
  %75 = vsyncmov %s74
  %s76 = vpop.sfrf %75
  %p77 = scmp.eq.s32.totalorder %s76, 0
  %p78 = pneg %p77
  %80 = shalt.err (%p78)

</llo_original>
